<compile_context>
chip_gen: v7x
topology: tpu7x:2x2x1
jax: 0.10.0
libtpu: 0.0.40
codegen_flags: <defaults>
</compile_context>

<pallas_src>
import numpy as np
import jax
import jax.numpy as jnp
from jax import lax
from jax.experimental import pallas as pl
from jax.experimental.pallas import tpu as pltpu

NEG = -1e30  # "minus infinity" that never produces NaNs in exp/max


def ctc_alpha_split_kernel(eb_ref, el_ref, plen_ref, tlen_ref, out_ref,
                           ab_ref, al_ref, fb_ref, fl_ref):
    # eb_ref   : (T_TILE, R_pad, B_TILE) f32 blank-state emissions (recursion steps t>=1)
    # el_ref   : (T_TILE, R_pad, B_TILE) f32 label-state emissions (rows >= L are inert padding)
    # plen_ref : (1, B_TILE) i32 pred_lens
    # tlen_ref : (1, B_TILE) i32 target_lens
    # out_ref  : (1, B_TILE) f32 per-sample log marginal prob
    # ab/al    : (R_pad, B_TILE) f32 alpha carry (blank / label states), VMEM scratch
    # fb/fl    : (R_pad, B_TILE) f32 alpha captured at t = pred_len - 1, VMEM scratch
    t_idx = pl.program_id(1)
    n_t = pl.num_programs(1)
    T_TILE, R_pad, B_TILE = eb_ref.shape

    neg = jnp.float32(NEG)
    j_iota = lax.broadcasted_iota(jnp.int32, (R_pad, B_TILE), 0)
    plen_row = plen_ref[...]                      # (1, B_TILE) int32

    # ---- t == 0 initialization (matches the PyTorch reference exactly) ----
    @pl.when(t_idx == 0)
    def _():
        log_small = jnp.log(jnp.float32(0.0001))
        log_init = jnp.log(jnp.float32(0.499))
        init = jnp.where(j_iota == 0, log_init, log_small)
        ab_ref[...] = init
        al_ref[...] = init
        first = plen_row == 1                     # pred_len == 1 -> finals come from t=0
        fb_ref[...] = jnp.where(first, init, neg)
        fl_ref[...] = jnp.where(first, init, neg)

    # ---- hoisted loop invariants ----
    plen_m1 = plen_row - 1                        # (1, B_TILE)
    row0_mask = j_iota == 0                       # mask for the shifted j-1 row
    t_base = t_idx * T_TILE + 1                   # global recursion time of local step 0

    def lse2(x, y):
        m = jnp.maximum(x, y)
        return m + jnp.log(jnp.exp(x - m) + jnp.exp(y - m))

    def lse3(x, y, z):
        m = jnp.maximum(jnp.maximum(x, y), z)
        return m + jnp.log(jnp.exp(x - m) + jnp.exp(y - m) + jnp.exp(z - m))

    def body(k, carry):
        ab, al, fb, fl = carry
        eb = eb_ref[k]                            # (R_pad, B_TILE)
        el = el_ref[k]
        # label[j-1] via a sublane roll (XLU) + mask of row 0
        al_sh = jnp.where(row0_mask, neg, pltpu.roll(al, shift=1, axis=0))
        ab_new = eb + lse2(ab, al_sh)             # blank state 2j  <- {blank j, label j-1}
        al_new = el + lse3(al, ab, al_sh)         # label state 2j+1 <- {label j, blank j, label j-1}
        hit = (t_base + k) == plen_m1             # capture alpha at t = pred_len - 1
        fb = jnp.where(hit, ab_new, fb)
        fl = jnp.where(hit, al_new, fl)
        return ab_new, al_new, fb, fl

    carry0 = (ab_ref[...], al_ref[...], fb_ref[...], fl_ref[...])
    ab, al, fb, fl = lax.fori_loop(0, T_TILE, body, carry0,
                                   unroll=min(8, T_TILE))
    ab_ref[...] = ab
    al_ref[...] = al
    fb_ref[...] = fb
    fl_ref[...] = fl

    # ---- per-sample logsumexp over the two final CTC states {2L_b - 1, 2L_b} ----
    @pl.when(t_idx == n_t - 1)
    def _():
        tl_row = tlen_ref[...]                                   # (1, B_TILE)
        vb = jnp.where(j_iota == tl_row, fb_ref[...], neg)       # blank state 2*L_b
        vl = jnp.where(j_iota == tl_row - 1, fl_ref[...], neg)   # label state 2*L_b - 1
        m = jnp.maximum(jnp.max(vb, axis=0, keepdims=True),
                        jnp.max(vl, axis=0, keepdims=True))      # (1, B_TILE)
        s = (jnp.sum(jnp.exp(vb - m), axis=0, keepdims=True)
             + jnp.sum(jnp.exp(vl - m), axis=0, keepdims=True))
        out_ref[...] = m + jnp.log(s)                            # (1, B_TILE)


def ctc_loss_pallas(prediction, target, pred_lens, target_lens):
    pred_lens_np = np.asarray(pred_lens, dtype=np.int32)
    target_lens_np = np.asarray(target_lens, dtype=np.int32)
    T = int(pred_lens_np.max())
    maxL = int(target_lens_np.max())
    L = maxL
    R = maxL + 1
    B = prediction.shape[1]
    W = target.shape[1]
    assert W == maxL, "target must be padded to max(target_lens) (as in the reference)"
    # TODO(synk): T/maxL are derived host-side, so new max lengths retrace; bucket lengths if they vary.

    predT = prediction[:T].astype(jnp.float32)                  # (T, B, A)

    # Blank-state emissions: faithful reproduction of the reference's
    #   prediction[:T, :, 0].repeat(maxL+1, 1, 1).view(T, B, maxL+1)  scrambled fill.
    blank2d = predT[:, :, 0]                                    # (T, B)
    blank_scr = jnp.broadcast_to(blank2d, (R, T, B)).reshape(T, B, R)   # (T, B, R)

    # Label-state emissions (gather of target symbols).
    b_idx = jnp.arange(B)[:, None]
    label_em = predT[:, b_idx, target]                          # (T, B, L)

    # Drop the unused t=0 slab and transpose to lane-dense (time, state, batch).
    eb = jnp.transpose(blank_scr[1:], (0, 2, 1))                # (T-1, R, B)
    el = jnp.transpose(label_em[1:], (0, 2, 1))                 # (T-1, L, B)

    # Pad the state axis to a sublane multiple (padding rows are provably inert).
    R_pad = -(-R // 8) * 8
    eb = jnp.pad(eb, ((0, 0), (0, R_pad - R), (0, 0)))
    el = jnp.pad(el, ((0, 0), (0, R_pad - L), (0, 0)))

    # Batch tiling: shard large batches across cores ("parallel" axis).
    if B >= 256 and B % 128 == 0:
        B_TILE = 128
    else:
        B_TILE = B
    n_b = B // B_TILE

    # Time tiling sized for a small VMEM footprint (v5e/v6e/v7x safe).
    TT = T - 1                                                  # recursion steps
    bytes_per_step = 2 * R_pad * B_TILE * 4
    t_budget = max(8, min(128, (2 << 20) // max(1, bytes_per_step)))
    t_budget = (t_budget // 8) * 8
    T_TILE = int(min(t_budget, max(8, -(-max(TT, 1) // 8) * 8)))
    n_t = max(1, -(-TT // T_TILE))
    T_steps = n_t * T_TILE
    eb = jnp.pad(eb, ((0, T_steps - TT), (0, 0), (0, 0)))       # padded steps use e=0 (harmless)
    el = jnp.pad(el, ((0, T_steps - TT), (0, 0), (0, 0)))

    plen2 = jnp.asarray(pred_lens_np).reshape(1, B)
    tlen2 = jnp.asarray(target_lens_np).reshape(1, B)

    total_steps = n_b * n_t * T_TILE
    cell = R_pad * B_TILE
    cost = pl.CostEstimate(
        flops=int(total_steps * cell * 16),
        transcendentals=int(total_steps * cell * 7),
        bytes_accessed=int(eb.size * 4 + el.size * 4 + 3 * B * 4),
    )

    log_marginals = pl.pallas_call(
        ctc_alpha_split_kernel,
        out_shape=jax.ShapeDtypeStruct((1, B), jnp.float32),
        grid_spec=pltpu.PrefetchScalarGridSpec(
            num_scalar_prefetch=0,
            grid=(n_b, n_t),
            in_specs=[
                pl.BlockSpec((T_TILE, R_pad, B_TILE), lambda b, t: (t, 0, b)),
                pl.BlockSpec((T_TILE, R_pad, B_TILE), lambda b, t: (t, 0, b)),
                pl.BlockSpec((1, B_TILE), lambda b, t: (0, b)),
                pl.BlockSpec((1, B_TILE), lambda b, t: (0, b)),
            ],
            out_specs=pl.BlockSpec((1, B_TILE), lambda b, t: (0, b)),
            scratch_shapes=[pltpu.VMEM((R_pad, B_TILE), jnp.float32)] * 4,
        ),
        compiler_params=pltpu.CompilerParams(
            dimension_semantics=("parallel", "arbitrary"),
            vmem_limit_bytes=32 * 1024 * 1024,
        ),
        cost_estimate=cost,
    )(eb, el, plen2, tlen2)

    return -(jnp.sum(log_marginals) / jnp.float32(B))


def ctc_loss_ref(prediction, target, pred_lens, target_lens):
    """Pure numpy re-implementation of the PyTorch forward (for validation)."""
    pred_lens = np.asarray(pred_lens)
    target_lens = np.asarray(target_lens)
    T = int(pred_lens.max())
    maxL = int(target_lens.max())
    S = 2 * maxL + 1
    B = prediction.shape[1]
    pred = np.asarray(prediction, dtype=np.float32)
    tgt = np.asarray(target)

    def lse(x, axis):
        m = np.max(x, axis=axis, keepdims=True)
        return np.squeeze(m + np.log(np.sum(np.exp(x - m), axis=axis, keepdims=True)), axis)

    alphas = np.zeros((T, B, S), np.float32)
    predT = pred[:T]
    blank = np.broadcast_to(predT[:, :, 0], (maxL + 1, T, B)).reshape(T, B, maxL + 1)
    alphas[:, :, 0:S:2] = blank
    b_idx = np.arange(B)[:, None]
    alphas[:, :, 1 : S - 1 : 2] = predT[:, b_idx, tgt]

    for t in range(T):
        if t == 0:
            alphas[0, :, :] = np.log(np.float32(0.0001))
            alphas[0, :, 0] = np.log(np.float32(0.499))
            alphas[0, :, 1] = np.log(np.float32(0.499))
            continue
        a = alphas[t - 1]
        alphas[t, :, 0] += a[:, 0]
        alphas[t, :, 1] += lse(a[:, 0:2], 1)
        a1 = a[:, 1:]
        nb = (a1.shape[1] - 3) // 2 + 1
        b_win = np.stack([a1[:, 2 * j : 2 * j + 3] for j in range(nb)], axis=1)
        nc = (a1.shape[1] - 2) // 2 + 1
        c_win = np.stack([a1[:, 2 * j : 2 * j + 2] for j in range(nc)], axis=1)
        alphas[t, :, 3 : S - 1 : 2] += lse(b_win, 2)
        alphas[t, :, 2:S:2] += lse(c_win, 2)

    total = 0.0
    for b in range(B):
        sid = 2 * int(target_lens[b])
        tid = int(pred_lens[b]) - 1
        fs = np.array([alphas[tid, b, sid - 1], alphas[tid, b, sid]], np.float32)
        total += lse(fs[None, :], 1)[0]
    return -(total / B)


if __name__ == "__main__":
    key = jax.random.PRNGKey(0)
    Tfull, B, A = 10, 2, 6          # padded seq length, batch, alphabet size
    maxL = 3                         # padded target word length

    k1, _ = jax.random.split(key)
    logits = jax.random.normal(k1, (Tfull, B, A), dtype=jnp.float32)
    prediction = jax.nn.log_softmax(logits, axis=-1)             # (T, B, A) log-probs
    target = jnp.array([[2, 3, 1], [4, 2, 1]], dtype=jnp.int32)  # (B, maxL)
    pred_lens = [8, 6]
    target_lens = [3, 2]

    loss = ctc_loss_pallas(prediction, target, pred_lens, target_lens)
    loss = jax.block_until_ready(loss)

    ref = ctc_loss_ref(np.asarray(prediction), np.asarray(target), pred_lens, target_lens)
    assert np.allclose(float(loss), float(ref), rtol=1e-4, atol=1e-3), (float(loss), float(ref))
    print("KERNEL_OK")
</pallas_src>

<mosaic_0001>
module attributes {stable_mosaic.version = 11 : i64} {
  func.func @ctc_alpha_split_kernel(%arg0: i32, %arg1: i32, %arg2: memref<8x8x2xf32, #tpu.memory_space<vmem>>, %arg3: memref<8x8x2xf32, #tpu.memory_space<vmem>>, %arg4: memref<1x2xi32, #tpu.memory_space<vmem>>, %arg5: memref<1x2xi32, #tpu.memory_space<vmem>>, %arg6: memref<1x2xf32, #tpu.memory_space<vmem>>, %arg7: memref<8x2xf32, #tpu.memory_space<vmem>>, %arg8: memref<8x2xf32, #tpu.memory_space<vmem>>, %arg9: memref<8x2xf32, #tpu.memory_space<vmem>>, %arg10: memref<8x2xf32, #tpu.memory_space<vmem>>) attributes {dimension_semantics = [#tpu.dimension_semantics<parallel>, #tpu.dimension_semantics<arbitrary>], iteration_bounds = array<i64: 1, 1>, scalar_prefetch = 0 : i64, scratch_operands = 4 : i64, tpu.core_type = #tpu.core_type<tc>, window_params = [{transform_indices = @transform_0, window_bounds = array<i64: 8, 8, 2>}, {transform_indices = @transform_1, window_bounds = array<i64: 8, 8, 2>}, {transform_indices = @transform_2, window_bounds = array<i64: 1, 2>}, {transform_indices = @transform_3, window_bounds = array<i64: 1, 2>}, {transform_indices = @transform_4, window_bounds = array<i64: 1, 2>}]} {
    %0 = tpu.iota {dimensions = array<i32: 0>} : vector<8x2xi32>
    %c0 = arith.constant 0 : index
    %c0_0 = arith.constant 0 : index
    %1 = vector.load %arg4[%c0, %c0_0] : memref<1x2xi32, #tpu.memory_space<vmem>>, vector<1x2xi32>
    %c0_i32 = arith.constant 0 : i32
    %2 = arith.cmpi eq, %arg1, %c0_i32 : i32
    %3 = arith.extui %2 : i1 to i32
    %cst = arith.constant -1.000000e+30 : f32
    %c0_i32_1 = arith.constant 0 : i32
    %4 = arith.cmpi ne, %3, %c0_i32_1 : i32
    scf.if %4 {
      %cst_67 = arith.constant 9.99999974E-5 : f32
      %342 = math.log %cst_67 : f32
      %cst_68 = arith.constant 4.990000e-01 : f32
      %343 = math.log %cst_68 : f32
      %c0_i32_69 = arith.constant 0 : i32
      %344 = vector.broadcast %c0_i32_69 : i32 to vector<8x2xi32>
      %345 = arith.cmpi eq, %0, %344 : vector<8x2xi32>
      %346 = vector.broadcast %343 : f32 to vector<8x2xf32>
      %347 = vector.broadcast %342 : f32 to vector<8x2xf32>
      %348 = arith.select %345, %346, %347 : vector<8x2xi1>, vector<8x2xf32>
      %c0_70 = arith.constant 0 : index
      %c0_71 = arith.constant 0 : index
      %349 = vector.load %arg7[%c0_70, %c0_71] : memref<8x2xf32, #tpu.memory_space<vmem>>, vector<8x2xf32>
      tpu.vector_store %arg7[%c0_70, %c0_71], %348 {strides = array<i32>} : memref<8x2xf32, #tpu.memory_space<vmem>>, vector<8x2xf32>,
      %c0_72 = arith.constant 0 : index
      %c0_73 = arith.constant 0 : index
      %350 = vector.load %arg8[%c0_72, %c0_73] : memref<8x2xf32, #tpu.memory_space<vmem>>, vector<8x2xf32>
      tpu.vector_store %arg8[%c0_72, %c0_73], %348 {strides = array<i32>} : memref<8x2xf32, #tpu.memory_space<vmem>>, vector<8x2xf32>,
      %c1_i32_74 = arith.constant 1 : i32
      %351 = vector.broadcast %c1_i32_74 : i32 to vector<1x2xi32>
      %352 = arith.cmpi eq, %1, %351 : vector<1x2xi32>
      %353 = vector.shape_cast %352 : vector<1x2xi1> to vector<1x2xi1>
      %354 = vector.broadcast %353 : vector<1x2xi1> to vector<8x2xi1>
      %355 = vector.broadcast %cst : f32 to vector<8x2xf32>
      %356 = arith.select %354, %348, %355 : vector<8x2xi1>, vector<8x2xf32>
      %c0_75 = arith.constant 0 : index
      %c0_76 = arith.constant 0 : index
      %357 = vector.load %arg9[%c0_75, %c0_76] : memref<8x2xf32, #tpu.memory_space<vmem>>, vector<8x2xf32>
      tpu.vector_store %arg9[%c0_75, %c0_76], %356 {strides = array<i32>} : memref<8x2xf32, #tpu.memory_space<vmem>>, vector<8x2xf32>,
      %358 = vector.shape_cast %352 : vector<1x2xi1> to vector<1x2xi1>
      %359 = vector.broadcast %358 : vector<1x2xi1> to vector<8x2xi1>
      %360 = vector.broadcast %cst : f32 to vector<8x2xf32>
      %361 = arith.select %359, %348, %360 : vector<8x2xi1>, vector<8x2xf32>
      %c0_77 = arith.constant 0 : index
      %c0_78 = arith.constant 0 : index
      %362 = vector.load %arg10[%c0_77, %c0_78] : memref<8x2xf32, #tpu.memory_space<vmem>>, vector<8x2xf32>
      tpu.vector_store %arg10[%c0_77, %c0_78], %361 {strides = array<i32>} : memref<8x2xf32, #tpu.memory_space<vmem>>, vector<8x2xf32>,
    } else {
    }
    %c1_i32 = arith.constant 1 : i32
    %5 = vector.broadcast %c1_i32 : i32 to vector<1x2xi32>
    %6 = arith.subi %1, %5 : vector<1x2xi32>
    %c0_i32_2 = arith.constant 0 : i32
    %7 = vector.broadcast %c0_i32_2 : i32 to vector<8x2xi32>
    %8 = arith.cmpi eq, %0, %7 : vector<8x2xi32>
    %c8_i32 = arith.constant 8 : i32
    %9 = arith.muli %arg1, %c8_i32 : i32
    %c1_i32_3 = arith.constant 1 : i32
    %10 = arith.addi %9, %c1_i32_3 : i32
    %c0_4 = arith.constant 0 : index
    %c0_5 = arith.constant 0 : index
    %11 = vector.load %arg7[%c0_4, %c0_5] : memref<8x2xf32, #tpu.memory_space<vmem>>, vector<8x2xf32>
    %c0_6 = arith.constant 0 : index
    %c0_7 = arith.constant 0 : index
    %12 = vector.load %arg8[%c0_6, %c0_7] : memref<8x2xf32, #tpu.memory_space<vmem>>, vector<8x2xf32>
    %c0_8 = arith.constant 0 : index
    %c0_9 = arith.constant 0 : index
    %13 = vector.load %arg9[%c0_8, %c0_9] : memref<8x2xf32, #tpu.memory_space<vmem>>, vector<8x2xf32>
    %c0_10 = arith.constant 0 : index
    %c0_11 = arith.constant 0 : index
    %14 = vector.load %arg10[%c0_10, %c0_11] : memref<8x2xf32, #tpu.memory_space<vmem>>, vector<8x2xf32>
    %cst_12 = arith.constant -1.000000e+30 : f32
    %c0_i32_13 = arith.constant 0 : i32
    %15 = arith.index_cast %c0_i32_13 : i32 to index
    %c0_14 = arith.constant 0 : index
    %c0_15 = arith.constant 0 : index
    %16 = vector.load %arg2[%15, %c0_14, %c0_15] : memref<8x8x2xf32, #tpu.memory_space<vmem>>, vector<1x8x2xf32>
    %17 = vector.shape_cast %16 : vector<1x8x2xf32> to vector<8x2xf32>
    %18 = arith.index_cast %c0_i32_13 : i32 to index
    %c0_16 = arith.constant 0 : index
    %c0_17 = arith.constant 0 : index
    %19 = vector.load %arg3[%18, %c0_16, %c0_17] : memref<8x8x2xf32, #tpu.memory_space<vmem>>, vector<1x8x2xf32>
    %20 = vector.shape_cast %19 : vector<1x8x2xf32> to vector<8x2xf32>
    %c1_i32_18 = arith.constant 1 : i32
    %21 = tpu.dynamic_rotate %12 by %c1_i32_18 dim 0 : vector<8x2xf32>, i32 -> vector<8x2xf32>
    %22 = vector.broadcast %cst_12 : f32 to vector<8x2xf32>
    %23 = arith.select %8, %22, %21 : vector<8x2xi1>, vector<8x2xf32>
    %24 = arith.maximumf %11, %23 : vector<8x2xf32>
    %25 = arith.subf %11, %24 : vector<8x2xf32>
    %26 = math.exp %25 : vector<8x2xf32>
    %27 = arith.subf %23, %24 : vector<8x2xf32>
    %28 = math.exp %27 : vector<8x2xf32>
    %29 = arith.addf %26, %28 : vector<8x2xf32>
    %30 = math.log %29 : vector<8x2xf32>
    %31 = arith.addf %24, %30 : vector<8x2xf32>
    %32 = arith.addf %17, %31 : vector<8x2xf32>
    %33 = arith.maximumf %12, %11 : vector<8x2xf32>
    %34 = arith.maximumf %33, %23 : vector<8x2xf32>
    %35 = arith.subf %12, %34 : vector<8x2xf32>
    %36 = math.exp %35 : vector<8x2xf32>
    %37 = arith.subf %11, %34 : vector<8x2xf32>
    %38 = math.exp %37 : vector<8x2xf32>
    %39 = arith.addf %36, %38 : vector<8x2xf32>
    %40 = arith.subf %23, %34 : vector<8x2xf32>
    %41 = math.exp %40 : vector<8x2xf32>
    %42 = arith.addf %39, %41 : vector<8x2xf32>
    %43 = math.log %42 : vector<8x2xf32>
    %44 = arith.addf %34, %43 : vector<8x2xf32>
    %45 = arith.addf %20, %44 : vector<8x2xf32>
    %46 = arith.addi %10, %c0_i32_13 : i32
    %47 = vector.broadcast %46 : i32 to vector<1x2xi32>
    %48 = arith.cmpi eq, %47, %6 : vector<1x2xi32>
    %49 = vector.shape_cast %48 : vector<1x2xi1> to vector<1x2xi1>
    %50 = vector.broadcast %49 : vector<1x2xi1> to vector<8x2xi1>
    %51 = arith.select %50, %32, %13 : vector<8x2xi1>, vector<8x2xf32>
    %52 = vector.shape_cast %48 : vector<1x2xi1> to vector<1x2xi1>
    %53 = vector.broadcast %52 : vector<1x2xi1> to vector<8x2xi1>
    %54 = arith.select %53, %45, %14 : vector<8x2xi1>, vector<8x2xf32>
    %c1_i32_19 = arith.constant 1 : i32
    %55 = arith.index_cast %c1_i32_19 : i32 to index
    %c0_20 = arith.constant 0 : index
    %c0_21 = arith.constant 0 : index
    %56 = vector.load %arg2[%55, %c0_20, %c0_21] : memref<8x8x2xf32, #tpu.memory_space<vmem>>, vector<1x8x2xf32>
    %57 = vector.shape_cast %56 : vector<1x8x2xf32> to vector<8x2xf32>
    %58 = arith.index_cast %c1_i32_19 : i32 to index
    %c0_22 = arith.constant 0 : index
    %c0_23 = arith.constant 0 : index
    %59 = vector.load %arg3[%58, %c0_22, %c0_23] : memref<8x8x2xf32, #tpu.memory_space<vmem>>, vector<1x8x2xf32>
    %60 = vector.shape_cast %59 : vector<1x8x2xf32> to vector<8x2xf32>
    %c1_i32_24 = arith.constant 1 : i32
    %61 = tpu.dynamic_rotate %45 by %c1_i32_24 dim 0 : vector<8x2xf32>, i32 -> vector<8x2xf32>
    %62 = vector.broadcast %cst_12 : f32 to vector<8x2xf32>
    %63 = arith.select %8, %62, %61 : vector<8x2xi1>, vector<8x2xf32>
    %64 = arith.maximumf %32, %63 : vector<8x2xf32>
    %65 = arith.subf %32, %64 : vector<8x2xf32>
    %66 = math.exp %65 : vector<8x2xf32>
    %67 = arith.subf %63, %64 : vector<8x2xf32>
    %68 = math.exp %67 : vector<8x2xf32>
    %69 = arith.addf %66, %68 : vector<8x2xf32>
    %70 = math.log %69 : vector<8x2xf32>
    %71 = arith.addf %64, %70 : vector<8x2xf32>
    %72 = arith.addf %57, %71 : vector<8x2xf32>
    %73 = arith.maximumf %45, %32 : vector<8x2xf32>
    %74 = arith.maximumf %73, %63 : vector<8x2xf32>
    %75 = arith.subf %45, %74 : vector<8x2xf32>
    %76 = math.exp %75 : vector<8x2xf32>
    %77 = arith.subf %32, %74 : vector<8x2xf32>
    %78 = math.exp %77 : vector<8x2xf32>
    %79 = arith.addf %76, %78 : vector<8x2xf32>
    %80 = arith.subf %63, %74 : vector<8x2xf32>
    %81 = math.exp %80 : vector<8x2xf32>
    %82 = arith.addf %79, %81 : vector<8x2xf32>
    %83 = math.log %82 : vector<8x2xf32>
    %84 = arith.addf %74, %83 : vector<8x2xf32>
    %85 = arith.addf %60, %84 : vector<8x2xf32>
    %86 = arith.addi %10, %c1_i32_19 : i32
    %87 = vector.broadcast %86 : i32 to vector<1x2xi32>
    %88 = arith.cmpi eq, %87, %6 : vector<1x2xi32>
    %89 = vector.shape_cast %88 : vector<1x2xi1> to vector<1x2xi1>
    %90 = vector.broadcast %89 : vector<1x2xi1> to vector<8x2xi1>
    %91 = arith.select %90, %72, %51 : vector<8x2xi1>, vector<8x2xf32>
    %92 = vector.shape_cast %88 : vector<1x2xi1> to vector<1x2xi1>
    %93 = vector.broadcast %92 : vector<1x2xi1> to vector<8x2xi1>
    %94 = arith.select %93, %85, %54 : vector<8x2xi1>, vector<8x2xf32>
    %c2_i32 = arith.constant 2 : i32
    %95 = arith.index_cast %c2_i32 : i32 to index
    %c0_25 = arith.constant 0 : index
    %c0_26 = arith.constant 0 : index
    %96 = vector.load %arg2[%95, %c0_25, %c0_26] : memref<8x8x2xf32, #tpu.memory_space<vmem>>, vector<1x8x2xf32>
    %97 = vector.shape_cast %96 : vector<1x8x2xf32> to vector<8x2xf32>
    %98 = arith.index_cast %c2_i32 : i32 to index
    %c0_27 = arith.constant 0 : index
    %c0_28 = arith.constant 0 : index
    %99 = vector.load %arg3[%98, %c0_27, %c0_28] : memref<8x8x2xf32, #tpu.memory_space<vmem>>, vector<1x8x2xf32>
    %100 = vector.shape_cast %99 : vector<1x8x2xf32> to vector<8x2xf32>
    %c1_i32_29 = arith.constant 1 : i32
    %101 = tpu.dynamic_rotate %85 by %c1_i32_29 dim 0 : vector<8x2xf32>, i32 -> vector<8x2xf32>
    %102 = vector.broadcast %cst_12 : f32 to vector<8x2xf32>
    %103 = arith.select %8, %102, %101 : vector<8x2xi1>, vector<8x2xf32>
    %104 = arith.maximumf %72, %103 : vector<8x2xf32>
    %105 = arith.subf %72, %104 : vector<8x2xf32>
    %106 = math.exp %105 : vector<8x2xf32>
    %107 = arith.subf %103, %104 : vector<8x2xf32>
    %108 = math.exp %107 : vector<8x2xf32>
    %109 = arith.addf %106, %108 : vector<8x2xf32>
    %110 = math.log %109 : vector<8x2xf32>
    %111 = arith.addf %104, %110 : vector<8x2xf32>
    %112 = arith.addf %97, %111 : vector<8x2xf32>
    %113 = arith.maximumf %85, %72 : vector<8x2xf32>
    %114 = arith.maximumf %113, %103 : vector<8x2xf32>
    %115 = arith.subf %85, %114 : vector<8x2xf32>
    %116 = math.exp %115 : vector<8x2xf32>
    %117 = arith.subf %72, %114 : vector<8x2xf32>
    %118 = math.exp %117 : vector<8x2xf32>
    %119 = arith.addf %116, %118 : vector<8x2xf32>
    %120 = arith.subf %103, %114 : vector<8x2xf32>
    %121 = math.exp %120 : vector<8x2xf32>
    %122 = arith.addf %119, %121 : vector<8x2xf32>
    %123 = math.log %122 : vector<8x2xf32>
    %124 = arith.addf %114, %123 : vector<8x2xf32>
    %125 = arith.addf %100, %124 : vector<8x2xf32>
    %126 = arith.addi %10, %c2_i32 : i32
    %127 = vector.broadcast %126 : i32 to vector<1x2xi32>
    %128 = arith.cmpi eq, %127, %6 : vector<1x2xi32>
    %129 = vector.shape_cast %128 : vector<1x2xi1> to vector<1x2xi1>
    %130 = vector.broadcast %129 : vector<1x2xi1> to vector<8x2xi1>
    %131 = arith.select %130, %112, %91 : vector<8x2xi1>, vector<8x2xf32>
    %132 = vector.shape_cast %128 : vector<1x2xi1> to vector<1x2xi1>
    %133 = vector.broadcast %132 : vector<1x2xi1> to vector<8x2xi1>
    %134 = arith.select %133, %125, %94 : vector<8x2xi1>, vector<8x2xf32>
    %c3_i32 = arith.constant 3 : i32
    %135 = arith.index_cast %c3_i32 : i32 to index
    %c0_30 = arith.constant 0 : index
    %c0_31 = arith.constant 0 : index
    %136 = vector.load %arg2[%135, %c0_30, %c0_31] : memref<8x8x2xf32, #tpu.memory_space<vmem>>, vector<1x8x2xf32>
    %137 = vector.shape_cast %136 : vector<1x8x2xf32> to vector<8x2xf32>
    %138 = arith.index_cast %c3_i32 : i32 to index
    %c0_32 = arith.constant 0 : index
    %c0_33 = arith.constant 0 : index
    %139 = vector.load %arg3[%138, %c0_32, %c0_33] : memref<8x8x2xf32, #tpu.memory_space<vmem>>, vector<1x8x2xf32>
    %140 = vector.shape_cast %139 : vector<1x8x2xf32> to vector<8x2xf32>
    %c1_i32_34 = arith.constant 1 : i32
    %141 = tpu.dynamic_rotate %125 by %c1_i32_34 dim 0 : vector<8x2xf32>, i32 -> vector<8x2xf32>
    %142 = vector.broadcast %cst_12 : f32 to vector<8x2xf32>
    %143 = arith.select %8, %142, %141 : vector<8x2xi1>, vector<8x2xf32>
    %144 = arith.maximumf %112, %143 : vector<8x2xf32>
    %145 = arith.subf %112, %144 : vector<8x2xf32>
    %146 = math.exp %145 : vector<8x2xf32>
    %147 = arith.subf %143, %144 : vector<8x2xf32>
    %148 = math.exp %147 : vector<8x2xf32>
    %149 = arith.addf %146, %148 : vector<8x2xf32>
    %150 = math.log %149 : vector<8x2xf32>
    %151 = arith.addf %144, %150 : vector<8x2xf32>
    %152 = arith.addf %137, %151 : vector<8x2xf32>
    %153 = arith.maximumf %125, %112 : vector<8x2xf32>
    %154 = arith.maximumf %153, %143 : vector<8x2xf32>
    %155 = arith.subf %125, %154 : vector<8x2xf32>
    %156 = math.exp %155 : vector<8x2xf32>
    %157 = arith.subf %112, %154 : vector<8x2xf32>
    %158 = math.exp %157 : vector<8x2xf32>
    %159 = arith.addf %156, %158 : vector<8x2xf32>
    %160 = arith.subf %143, %154 : vector<8x2xf32>
    %161 = math.exp %160 : vector<8x2xf32>
    %162 = arith.addf %159, %161 : vector<8x2xf32>
    %163 = math.log %162 : vector<8x2xf32>
    %164 = arith.addf %154, %163 : vector<8x2xf32>
    %165 = arith.addf %140, %164 : vector<8x2xf32>
    %166 = arith.addi %10, %c3_i32 : i32
    %167 = vector.broadcast %166 : i32 to vector<1x2xi32>
    %168 = arith.cmpi eq, %167, %6 : vector<1x2xi32>
    %169 = vector.shape_cast %168 : vector<1x2xi1> to vector<1x2xi1>
    %170 = vector.broadcast %169 : vector<1x2xi1> to vector<8x2xi1>
    %171 = arith.select %170, %152, %131 : vector<8x2xi1>, vector<8x2xf32>
    %172 = vector.shape_cast %168 : vector<1x2xi1> to vector<1x2xi1>
    %173 = vector.broadcast %172 : vector<1x2xi1> to vector<8x2xi1>
    %174 = arith.select %173, %165, %134 : vector<8x2xi1>, vector<8x2xf32>
    %c4_i32 = arith.constant 4 : i32
    %175 = arith.index_cast %c4_i32 : i32 to index
    %c0_35 = arith.constant 0 : index
    %c0_36 = arith.constant 0 : index
    %176 = vector.load %arg2[%175, %c0_35, %c0_36] : memref<8x8x2xf32, #tpu.memory_space<vmem>>, vector<1x8x2xf32>
    %177 = vector.shape_cast %176 : vector<1x8x2xf32> to vector<8x2xf32>
    %178 = arith.index_cast %c4_i32 : i32 to index
    %c0_37 = arith.constant 0 : index
    %c0_38 = arith.constant 0 : index
    %179 = vector.load %arg3[%178, %c0_37, %c0_38] : memref<8x8x2xf32, #tpu.memory_space<vmem>>, vector<1x8x2xf32>
    %180 = vector.shape_cast %179 : vector<1x8x2xf32> to vector<8x2xf32>
    %c1_i32_39 = arith.constant 1 : i32
    %181 = tpu.dynamic_rotate %165 by %c1_i32_39 dim 0 : vector<8x2xf32>, i32 -> vector<8x2xf32>
    %182 = vector.broadcast %cst_12 : f32 to vector<8x2xf32>
    %183 = arith.select %8, %182, %181 : vector<8x2xi1>, vector<8x2xf32>
    %184 = arith.maximumf %152, %183 : vector<8x2xf32>
    %185 = arith.subf %152, %184 : vector<8x2xf32>
    %186 = math.exp %185 : vector<8x2xf32>
    %187 = arith.subf %183, %184 : vector<8x2xf32>
    %188 = math.exp %187 : vector<8x2xf32>
    %189 = arith.addf %186, %188 : vector<8x2xf32>
    %190 = math.log %189 : vector<8x2xf32>
    %191 = arith.addf %184, %190 : vector<8x2xf32>
    %192 = arith.addf %177, %191 : vector<8x2xf32>
    %193 = arith.maximumf %165, %152 : vector<8x2xf32>
    %194 = arith.maximumf %193, %183 : vector<8x2xf32>
    %195 = arith.subf %165, %194 : vector<8x2xf32>
    %196 = math.exp %195 : vector<8x2xf32>
    %197 = arith.subf %152, %194 : vector<8x2xf32>
    %198 = math.exp %197 : vector<8x2xf32>
    %199 = arith.addf %196, %198 : vector<8x2xf32>
    %200 = arith.subf %183, %194 : vector<8x2xf32>
    %201 = math.exp %200 : vector<8x2xf32>
    %202 = arith.addf %199, %201 : vector<8x2xf32>
    %203 = math.log %202 : vector<8x2xf32>
    %204 = arith.addf %194, %203 : vector<8x2xf32>
    %205 = arith.addf %180, %204 : vector<8x2xf32>
    %206 = arith.addi %10, %c4_i32 : i32
    %207 = vector.broadcast %206 : i32 to vector<1x2xi32>
    %208 = arith.cmpi eq, %207, %6 : vector<1x2xi32>
    %209 = vector.shape_cast %208 : vector<1x2xi1> to vector<1x2xi1>
    %210 = vector.broadcast %209 : vector<1x2xi1> to vector<8x2xi1>
    %211 = arith.select %210, %192, %171 : vector<8x2xi1>, vector<8x2xf32>
    %212 = vector.shape_cast %208 : vector<1x2xi1> to vector<1x2xi1>
    %213 = vector.broadcast %212 : vector<1x2xi1> to vector<8x2xi1>
    %214 = arith.select %213, %205, %174 : vector<8x2xi1>, vector<8x2xf32>
    %c5_i32 = arith.constant 5 : i32
    %215 = arith.index_cast %c5_i32 : i32 to index
    %c0_40 = arith.constant 0 : index
    %c0_41 = arith.constant 0 : index
    %216 = vector.load %arg2[%215, %c0_40, %c0_41] : memref<8x8x2xf32, #tpu.memory_space<vmem>>, vector<1x8x2xf32>
    %217 = vector.shape_cast %216 : vector<1x8x2xf32> to vector<8x2xf32>
    %218 = arith.index_cast %c5_i32 : i32 to index
    %c0_42 = arith.constant 0 : index
    %c0_43 = arith.constant 0 : index
    %219 = vector.load %arg3[%218, %c0_42, %c0_43] : memref<8x8x2xf32, #tpu.memory_space<vmem>>, vector<1x8x2xf32>
    %220 = vector.shape_cast %219 : vector<1x8x2xf32> to vector<8x2xf32>
    %c1_i32_44 = arith.constant 1 : i32
    %221 = tpu.dynamic_rotate %205 by %c1_i32_44 dim 0 : vector<8x2xf32>, i32 -> vector<8x2xf32>
    %222 = vector.broadcast %cst_12 : f32 to vector<8x2xf32>
    %223 = arith.select %8, %222, %221 : vector<8x2xi1>, vector<8x2xf32>
    %224 = arith.maximumf %192, %223 : vector<8x2xf32>
    %225 = arith.subf %192, %224 : vector<8x2xf32>
    %226 = math.exp %225 : vector<8x2xf32>
    %227 = arith.subf %223, %224 : vector<8x2xf32>
    %228 = math.exp %227 : vector<8x2xf32>
    %229 = arith.addf %226, %228 : vector<8x2xf32>
    %230 = math.log %229 : vector<8x2xf32>
    %231 = arith.addf %224, %230 : vector<8x2xf32>
    %232 = arith.addf %217, %231 : vector<8x2xf32>
    %233 = arith.maximumf %205, %192 : vector<8x2xf32>
    %234 = arith.maximumf %233, %223 : vector<8x2xf32>
    %235 = arith.subf %205, %234 : vector<8x2xf32>
    %236 = math.exp %235 : vector<8x2xf32>
    %237 = arith.subf %192, %234 : vector<8x2xf32>
    %238 = math.exp %237 : vector<8x2xf32>
    %239 = arith.addf %236, %238 : vector<8x2xf32>
    %240 = arith.subf %223, %234 : vector<8x2xf32>
    %241 = math.exp %240 : vector<8x2xf32>
    %242 = arith.addf %239, %241 : vector<8x2xf32>
    %243 = math.log %242 : vector<8x2xf32>
    %244 = arith.addf %234, %243 : vector<8x2xf32>
    %245 = arith.addf %220, %244 : vector<8x2xf32>
    %246 = arith.addi %10, %c5_i32 : i32
    %247 = vector.broadcast %246 : i32 to vector<1x2xi32>
    %248 = arith.cmpi eq, %247, %6 : vector<1x2xi32>
    %249 = vector.shape_cast %248 : vector<1x2xi1> to vector<1x2xi1>
    %250 = vector.broadcast %249 : vector<1x2xi1> to vector<8x2xi1>
    %251 = arith.select %250, %232, %211 : vector<8x2xi1>, vector<8x2xf32>
    %252 = vector.shape_cast %248 : vector<1x2xi1> to vector<1x2xi1>
    %253 = vector.broadcast %252 : vector<1x2xi1> to vector<8x2xi1>
    %254 = arith.select %253, %245, %214 : vector<8x2xi1>, vector<8x2xf32>
    %c6_i32 = arith.constant 6 : i32
    %255 = arith.index_cast %c6_i32 : i32 to index
    %c0_45 = arith.constant 0 : index
    %c0_46 = arith.constant 0 : index
    %256 = vector.load %arg2[%255, %c0_45, %c0_46] : memref<8x8x2xf32, #tpu.memory_space<vmem>>, vector<1x8x2xf32>
    %257 = vector.shape_cast %256 : vector<1x8x2xf32> to vector<8x2xf32>
    %258 = arith.index_cast %c6_i32 : i32 to index
    %c0_47 = arith.constant 0 : index
    %c0_48 = arith.constant 0 : index
    %259 = vector.load %arg3[%258, %c0_47, %c0_48] : memref<8x8x2xf32, #tpu.memory_space<vmem>>, vector<1x8x2xf32>
    %260 = vector.shape_cast %259 : vector<1x8x2xf32> to vector<8x2xf32>
    %c1_i32_49 = arith.constant 1 : i32
    %261 = tpu.dynamic_rotate %245 by %c1_i32_49 dim 0 : vector<8x2xf32>, i32 -> vector<8x2xf32>
    %262 = vector.broadcast %cst_12 : f32 to vector<8x2xf32>
    %263 = arith.select %8, %262, %261 : vector<8x2xi1>, vector<8x2xf32>
    %264 = arith.maximumf %232, %263 : vector<8x2xf32>
    %265 = arith.subf %232, %264 : vector<8x2xf32>
    %266 = math.exp %265 : vector<8x2xf32>
    %267 = arith.subf %263, %264 : vector<8x2xf32>
    %268 = math.exp %267 : vector<8x2xf32>
    %269 = arith.addf %266, %268 : vector<8x2xf32>
    %270 = math.log %269 : vector<8x2xf32>
    %271 = arith.addf %264, %270 : vector<8x2xf32>
    %272 = arith.addf %257, %271 : vector<8x2xf32>
    %273 = arith.maximumf %245, %232 : vector<8x2xf32>
    %274 = arith.maximumf %273, %263 : vector<8x2xf32>
    %275 = arith.subf %245, %274 : vector<8x2xf32>
    %276 = math.exp %275 : vector<8x2xf32>
    %277 = arith.subf %232, %274 : vector<8x2xf32>
    %278 = math.exp %277 : vector<8x2xf32>
    %279 = arith.addf %276, %278 : vector<8x2xf32>
    %280 = arith.subf %263, %274 : vector<8x2xf32>
    %281 = math.exp %280 : vector<8x2xf32>
    %282 = arith.addf %279, %281 : vector<8x2xf32>
    %283 = math.log %282 : vector<8x2xf32>
    %284 = arith.addf %274, %283 : vector<8x2xf32>
    %285 = arith.addf %260, %284 : vector<8x2xf32>
    %286 = arith.addi %10, %c6_i32 : i32
    %287 = vector.broadcast %286 : i32 to vector<1x2xi32>
    %288 = arith.cmpi eq, %287, %6 : vector<1x2xi32>
    %289 = vector.shape_cast %288 : vector<1x2xi1> to vector<1x2xi1>
    %290 = vector.broadcast %289 : vector<1x2xi1> to vector<8x2xi1>
    %291 = arith.select %290, %272, %251 : vector<8x2xi1>, vector<8x2xf32>
    %292 = vector.shape_cast %288 : vector<1x2xi1> to vector<1x2xi1>
    %293 = vector.broadcast %292 : vector<1x2xi1> to vector<8x2xi1>
    %294 = arith.select %293, %285, %254 : vector<8x2xi1>, vector<8x2xf32>
    %c7_i32 = arith.constant 7 : i32
    %295 = arith.index_cast %c7_i32 : i32 to index
    %c0_50 = arith.constant 0 : index
    %c0_51 = arith.constant 0 : index
    %296 = vector.load %arg2[%295, %c0_50, %c0_51] : memref<8x8x2xf32, #tpu.memory_space<vmem>>, vector<1x8x2xf32>
    %297 = vector.shape_cast %296 : vector<1x8x2xf32> to vector<8x2xf32>
    %298 = arith.index_cast %c7_i32 : i32 to index
    %c0_52 = arith.constant 0 : index
    %c0_53 = arith.constant 0 : index
    %299 = vector.load %arg3[%298, %c0_52, %c0_53] : memref<8x8x2xf32, #tpu.memory_space<vmem>>, vector<1x8x2xf32>
    %300 = vector.shape_cast %299 : vector<1x8x2xf32> to vector<8x2xf32>
    %c1_i32_54 = arith.constant 1 : i32
    %301 = tpu.dynamic_rotate %285 by %c1_i32_54 dim 0 : vector<8x2xf32>, i32 -> vector<8x2xf32>
    %302 = vector.broadcast %cst_12 : f32 to vector<8x2xf32>
    %303 = arith.select %8, %302, %301 : vector<8x2xi1>, vector<8x2xf32>
    %304 = arith.maximumf %272, %303 : vector<8x2xf32>
    %305 = arith.subf %272, %304 : vector<8x2xf32>
    %306 = math.exp %305 : vector<8x2xf32>
    %307 = arith.subf %303, %304 : vector<8x2xf32>
    %308 = math.exp %307 : vector<8x2xf32>
    %309 = arith.addf %306, %308 : vector<8x2xf32>
    %310 = math.log %309 : vector<8x2xf32>
    %311 = arith.addf %304, %310 : vector<8x2xf32>
    %312 = arith.addf %297, %311 : vector<8x2xf32>
    %313 = arith.maximumf %285, %272 : vector<8x2xf32>
    %314 = arith.maximumf %313, %303 : vector<8x2xf32>
    %315 = arith.subf %285, %314 : vector<8x2xf32>
    %316 = math.exp %315 : vector<8x2xf32>
    %317 = arith.subf %272, %314 : vector<8x2xf32>
    %318 = math.exp %317 : vector<8x2xf32>
    %319 = arith.addf %316, %318 : vector<8x2xf32>
    %320 = arith.subf %303, %314 : vector<8x2xf32>
    %321 = math.exp %320 : vector<8x2xf32>
    %322 = arith.addf %319, %321 : vector<8x2xf32>
    %323 = math.log %322 : vector<8x2xf32>
    %324 = arith.addf %314, %323 : vector<8x2xf32>
    %325 = arith.addf %300, %324 : vector<8x2xf32>
    %326 = arith.addi %10, %c7_i32 : i32
    %327 = vector.broadcast %326 : i32 to vector<1x2xi32>
    %328 = arith.cmpi eq, %327, %6 : vector<1x2xi32>
    %329 = vector.shape_cast %328 : vector<1x2xi1> to vector<1x2xi1>
    %330 = vector.broadcast %329 : vector<1x2xi1> to vector<8x2xi1>
    %331 = arith.select %330, %312, %291 : vector<8x2xi1>, vector<8x2xf32>
    %332 = vector.shape_cast %328 : vector<1x2xi1> to vector<1x2xi1>
    %333 = vector.broadcast %332 : vector<1x2xi1> to vector<8x2xi1>
    %334 = arith.select %333, %325, %294 : vector<8x2xi1>, vector<8x2xf32>
    %c8_i32_55 = arith.constant 8 : i32
    %c0_56 = arith.constant 0 : index
    %c0_57 = arith.constant 0 : index
    %335 = vector.load %arg7[%c0_56, %c0_57] : memref<8x2xf32, #tpu.memory_space<vmem>>, vector<8x2xf32>
    tpu.vector_store %arg7[%c0_56, %c0_57], %312 {strides = array<i32>} : memref<8x2xf32, #tpu.memory_space<vmem>>, vector<8x2xf32>,
    %c0_58 = arith.constant 0 : index
    %c0_59 = arith.constant 0 : index
    %336 = vector.load %arg8[%c0_58, %c0_59] : memref<8x2xf32, #tpu.memory_space<vmem>>, vector<8x2xf32>
    tpu.vector_store %arg8[%c0_58, %c0_59], %325 {strides = array<i32>} : memref<8x2xf32, #tpu.memory_space<vmem>>, vector<8x2xf32>,
    %c0_60 = arith.constant 0 : index
    %c0_61 = arith.constant 0 : index
    %337 = vector.load %arg9[%c0_60, %c0_61] : memref<8x2xf32, #tpu.memory_space<vmem>>, vector<8x2xf32>
    tpu.vector_store %arg9[%c0_60, %c0_61], %331 {strides = array<i32>} : memref<8x2xf32, #tpu.memory_space<vmem>>, vector<8x2xf32>,
    %c0_62 = arith.constant 0 : index
    %c0_63 = arith.constant 0 : index
    %338 = vector.load %arg10[%c0_62, %c0_63] : memref<8x2xf32, #tpu.memory_space<vmem>>, vector<8x2xf32>
    tpu.vector_store %arg10[%c0_62, %c0_63], %334 {strides = array<i32>} : memref<8x2xf32, #tpu.memory_space<vmem>>, vector<8x2xf32>,
    %c0_i32_64 = arith.constant 0 : i32
    %339 = arith.cmpi eq, %arg1, %c0_i32_64 : i32
    %340 = arith.extui %339 : i1 to i32
    %cst_65 = arith.constant -1.000000e+30 : f32
    %c0_i32_66 = arith.constant 0 : i32
    %341 = arith.cmpi ne, %340, %c0_i32_66 : i32
    scf.if %341 {
      %c0_67 = arith.constant 0 : index
      %c0_68 = arith.constant 0 : index
      %342 = vector.load %arg5[%c0_67, %c0_68] : memref<1x2xi32, #tpu.memory_space<vmem>>, vector<1x2xi32>
      %343 = vector.broadcast %342 : vector<1x2xi32> to vector<8x2xi32>
      %344 = arith.cmpi eq, %0, %343 : vector<8x2xi32>
      %c0_69 = arith.constant 0 : index
      %c0_70 = arith.constant 0 : index
      %345 = vector.load %arg9[%c0_69, %c0_70] : memref<8x2xf32, #tpu.memory_space<vmem>>, vector<8x2xf32>
      %346 = vector.broadcast %cst_65 : f32 to vector<8x2xf32>
      %347 = arith.select %344, %345, %346 : vector<8x2xi1>, vector<8x2xf32>
      %c1_i32_71 = arith.constant 1 : i32
      %348 = vector.broadcast %c1_i32_71 : i32 to vector<1x2xi32>
      %349 = arith.subi %342, %348 : vector<1x2xi32>
      %350 = vector.broadcast %349 : vector<1x2xi32> to vector<8x2xi32>
      %351 = arith.cmpi eq, %0, %350 : vector<8x2xi32>
      %c0_72 = arith.constant 0 : index
      %c0_73 = arith.constant 0 : index
      %352 = vector.load %arg10[%c0_72, %c0_73] : memref<8x2xf32, #tpu.memory_space<vmem>>, vector<8x2xf32>
      %353 = vector.broadcast %cst_65 : f32 to vector<8x2xf32>
      %354 = arith.select %351, %352, %353 : vector<8x2xi1>, vector<8x2xf32>
      %cst_74 = arith.constant dense<0xFF800000> : vector<2xf32>
      %355 = vector.multi_reduction <maximumf>, %347, %cst_74 [0] : vector<8x2xf32> to vector<2xf32>
      %356 = vector.shape_cast %355 : vector<2xf32> to vector<1x2xf32>
      %cst_75 = arith.constant dense<0xFF800000> : vector<2xf32>
      %357 = vector.multi_reduction <maximumf>, %354, %cst_75 [0] : vector<8x2xf32> to vector<2xf32>
      %358 = vector.shape_cast %357 : vector<2xf32> to vector<1x2xf32>
      %359 = arith.maximumf %356, %358 : vector<1x2xf32>
      %360 = vector.broadcast %359 : vector<1x2xf32> to vector<8x2xf32>
      %361 = arith.subf %347, %360 : vector<8x2xf32>
      %362 = math.exp %361 : vector<8x2xf32>
      %cst_76 = arith.constant dense<0.000000e+00> : vector<2xf32>
      %363 = vector.multi_reduction <add>, %362, %cst_76 [0] : vector<8x2xf32> to vector<2xf32>
      %364 = vector.shape_cast %363 : vector<2xf32> to vector<1x2xf32>
      %365 = vector.broadcast %359 : vector<1x2xf32> to vector<8x2xf32>
      %366 = arith.subf %354, %365 : vector<8x2xf32>
      %367 = math.exp %366 : vector<8x2xf32>
      %cst_77 = arith.constant dense<0.000000e+00> : vector<2xf32>
      %368 = vector.multi_reduction <add>, %367, %cst_77 [0] : vector<8x2xf32> to vector<2xf32>
      %369 = vector.shape_cast %368 : vector<2xf32> to vector<1x2xf32>
      %370 = arith.addf %364, %369 : vector<1x2xf32>
      %371 = math.log %370 : vector<1x2xf32>
      %372 = arith.addf %359, %371 : vector<1x2xf32>
      %c0_78 = arith.constant 0 : index
      %c0_79 = arith.constant 0 : index
      %373 = vector.load %arg6[%c0_78, %c0_79] : memref<1x2xf32, #tpu.memory_space<vmem>>, vector<1x2xf32>
      tpu.vector_store %arg6[%c0_78, %c0_79], %372 {strides = array<i32>} : memref<1x2xf32, #tpu.memory_space<vmem>>, vector<1x2xf32>,
    } else {
    }
    return
  }
  func.func @transform_0(%arg0: i32, %arg1: i32) -> (i32, i32, i32) {
    %c0_i32 = arith.constant 0 : i32
    %c0_i32_0 = arith.constant 0 : i32
    return %arg1, %c0_i32, %arg0 : i32, i32, i32
  }
  func.func @transform_1(%arg0: i32, %arg1: i32) -> (i32, i32, i32) {
    %c0_i32 = arith.constant 0 : i32
    %c0_i32_0 = arith.constant 0 : i32
    return %arg1, %c0_i32, %arg0 : i32, i32, i32
  }
  func.func @transform_2(%arg0: i32, %arg1: i32) -> (i32, i32) {
    %c0_i32 = arith.constant 0 : i32
    %c0_i32_0 = arith.constant 0 : i32
    return %c0_i32, %arg0 : i32, i32
  }
  func.func @transform_3(%arg0: i32, %arg1: i32) -> (i32, i32) {
    %c0_i32 = arith.constant 0 : i32
    %c0_i32_0 = arith.constant 0 : i32
    return %c0_i32, %arg0 : i32, i32
  }
  func.func @transform_4(%arg0: i32, %arg1: i32) -> (i32, i32) {
    %c0_i32 = arith.constant 0 : i32
    %c0_i32_0 = arith.constant 0 : i32
    return %c0_i32, %arg0 : i32, i32
  }
}

</mosaic_0001>

<llo_original>
// kernel: tpu_custom_call.1
$region0: #{tpu_custom_call.1}
  #allocation0 [shape = 'u32[]', space=smem, size = 0x4, offset = 0x4, fixed_abs, tag = 'smem constant byte address 0x4 - core index']
  #allocation1 [shape = 'u32[144,128]{1,0:T(1,128)}', space=vmem, size = 0x12000, scoped, tag = 'internal scratch']
  #allocation2 [shape = 'f32[8,2]{1,0:T(8,128)}', space=vmem, size = 0x1000, scoped, tag = 'scratch operand']
  #allocation3 [shape = 'f32[8,2]{1,0:T(8,128)}', space=vmem, size = 0x1000, scoped, tag = 'scratch operand']
  #allocation4 [shape = 'f32[8,2]{1,0:T(8,128)}', space=vmem, size = 0x1000, scoped, tag = 'scratch operand']
  #allocation5 [shape = 'f32[8,2]{1,0:T(8,128)}', space=vmem, size = 0x1000, scoped, tag = 'scratch operand']
  %s0 = inlined_call_operand.vmem [shape: f32[8,8,2], index: 0, kind: input, shape index: {}]
  %s1 = inlined_call_operand.vmem [shape: f32[8,8,2], index: 1, kind: input, shape index: {}]
  %s2 = inlined_call_operand.vmem [shape: s32[1,2], index: 2, kind: input, shape index: {}]
  %s3 = inlined_call_operand.vmem [shape: s32[1,2], index: 3, kind: input, shape index: {}]
  %s4 = inlined_call_operand.hbm [shape: f32[1,2], index: 4, kind: output, shape index: {}]
  %s5 = sld [smem:[#allocation0]]
  $region34: #{tpu_custom_call.1} parent=0
    _
  %s7 = ssub.s32 1, %s5
  %s8 = scalar_select 0, %s7, %s5
  $region1: #{tpu_custom_call.1} parent=0
    #allocation6 [shape = 'u8[512]{0}', space=vmem, size = 0x400, scoped, tag = 'output window, operand 0, single buffered']
    #allocation7 [shape = 's32[1]{0}', space=sflag, size = 0x4, scoped, tag = 'scoped memory for tpu_custom_call.1']
    %9 = vsyncpa [#allocation7], 0
    // Predicated region
    $region2: #{tpu_custom_call.1} parent=1 // pred_check
      _
    $region3: #{tpu_custom_call.1} parent=1 // pred_check_branch
      %11 = sbr.rel (0) target = $region5
    $region4: #{tpu_custom_call.1} parent=1 // pred_region
      _
    $region5: #{tpu_custom_call.1} parent=1 // pred_fallthru
      _
    // Predicated region
    $region6: #{tpu_custom_call.1} parent=1 // pred_check
      _
    $region7: #{tpu_custom_call.1} parent=1 // pred_check_branch
      %13 = sbr.rel (0) target = $region9
    $region8: #{tpu_custom_call.1} parent=1 // pred_region
      _
    $region9: #{tpu_custom_call.1} parent=1 // pred_fallthru
      _
    // Predicated region
    $region10: #{tpu_custom_call.1} parent=1 // pred_check
      _
    $region11: #{tpu_custom_call.1} parent=1 // pred_check_branch
      %15 = sbr.rel (0) target = $region13
    $region12: #{tpu_custom_call.1} parent=1 // pred_region
      _
    $region13: #{tpu_custom_call.1} parent=1 // pred_fallthru
      _
    // Predicated region
    $region14: #{tpu_custom_call.1} parent=1 // pred_check
      _
    $region15: #{tpu_custom_call.1} parent=1 // pred_check_branch
      %17 = sbr.rel (0) target = $region17
    $region16: #{tpu_custom_call.1} parent=1 // pred_region
      _
    $region17: #{tpu_custom_call.1} parent=1 // pred_fallthru
      _
    %v18 = vlaneseq
    %v19 = vshrl.u32 %v18, 7
    %v20 = vld [vmem:[%s2] sm:$0x1]
    %p21 = scmp.eq.s32.totalorder 0, 0
    // Predicated region
    $region18: #{tpu_custom_call.1} parent=1 // pred_check
      %p22 = pneg %p21
    $region19: #{tpu_custom_call.1} parent=1 // pred_check_branch
      %24 = sbr.rel (%p22) target = $region21
    $region20: #{tpu_custom_call.1} parent=1 // pred_region
      %vm25 = vcmp.eq.s32.totalorder %v19, 0
      %v26 = vsel %vm25, -0.6951492, -9.2103405
      %vm27 = vcmask 15360
      %28 = vst.msk [vmem:[#allocation2] sm:$0xff] %vm27, %v26
      %29 = vst.msk [vmem:[#allocation3] sm:$0xff] %vm27, %v26
      %vm30 = vcmp.eq.s32.totalorder %v20, 1
      %v31 = vsel %vm30, 1, 0
      %v32 = vlaneseq
      %v33 = vshrl.u32 %v32, 7
      %v34 = vsub.s32 0, %v33
      %v35 = vrot.slane %v31, %v34
      %vm36 = vcmp.eq.s32.totalorder %v35, 1
      %v37 = vsel %vm36, %v26, -1e+30
      %38 = vst.msk [vmem:[#allocation4] sm:$0xff] %vm27, %v37
      %39 = vst.msk [vmem:[#allocation5] sm:$0xff] %vm27, %v37
    $region21: #{tpu_custom_call.1} parent=1 // pred_fallthru
      _
    %v40 = vsub.s32 %v20, 1
    %vm41 = vcmp.eq.s32.totalorder %v19, 0
    %s42 = smul.u32 0, 8
    %s43 = sadd.s32 %s42, 1
    %v44 = vld [vmem:[#allocation2] sm:$0xff]
    %v45 = vld [vmem:[#allocation3] sm:$0xff]
    %v46 = vld [vmem:[#allocation4] sm:$0xff]
    %v47 = vld [vmem:[#allocation5] sm:$0xff]
    %v48 = vld [vmem:[%s0] sm:$0xff]
    %v49 = vld [vmem:[%s1] sm:$0xff]
    %v50 = vrot.slane %v45, 7
    %v51 = vsel %vm41, -1e+30, %v50
    %v52 = vmax.f32 %v44, %v51
    %v53 = vsub.f32 %v44, %v52
    %v54 = vmul.f32 %v53, 1.442695
    %v55 = vpow.pop %v54
    %v56 = vsub.f32 %v51, %v52
    %v57 = vmul.f32 %v56, 1.442695
    %v58 = vpow.pop %v57
    %v59 = vadd.f32 %v55, %v58
    %v60 = vlog2.pop %v59
    %v61 = vmul.f32 %v60, 0.6931472
    %v62 = vadd.f32 %v52, %v61
    %v63 = vadd.f32 %v48, %v62
    %v64 = vmax.f32 %v45, %v44
    %v65 = vmax.f32 %v64, %v51
    %v66 = vsub.f32 %v45, %v65
    %v67 = vmul.f32 %v66, 1.442695
    %v68 = vpow.pop %v67
    %v69 = vsub.f32 %v44, %v65
    %v70 = vmul.f32 %v69, 1.442695
    %v71 = vpow.pop %v70
    %v72 = vadd.f32 %v68, %v71
    %v73 = vsub.f32 %v51, %v65
    %v74 = vmul.f32 %v73, 1.442695
    %v75 = vpow.pop %v74
    %v76 = vadd.f32 %v72, %v75
    %v77 = vlog2.pop %v76
    %v78 = vmul.f32 %v77, 0.6931472
    %v79 = vadd.f32 %v65, %v78
    %v80 = vadd.f32 %v49, %v79
    %v81 = vstv %s43
    %vm82 = vcmp.eq.s32.totalorder %v81, %v40
    %v83 = vsel %vm82, 1, 0
    %v84 = vlaneseq
    %v85 = vshrl.u32 %v84, 7
    %v86 = vsub.s32 0, %v85
    %v87 = vrot.slane %v83, %v86
    %vm88 = vcmp.eq.s32.totalorder %v87, 1
    %v89 = vsel %vm88, %v63, %v46
    %v90 = vsel %vm88, %v80, %v47
    %s91 = scalar_lea.vmem %s0, 8
    %v92 = vld [vmem:[%s91] sm:$0xff]
    %s93 = scalar_lea.vmem %s1, 8
    %v94 = vld [vmem:[%s93] sm:$0xff]
    %v95 = vrot.slane %v80, 7
    %v96 = vsel %vm41, -1e+30, %v95
    %v97 = vmax.f32 %v63, %v96
    %v98 = vsub.f32 %v63, %v97
    %v99 = vmul.f32 %v98, 1.442695
    %v100 = vpow.pop %v99
    %v101 = vsub.f32 %v96, %v97
    %v102 = vmul.f32 %v101, 1.442695
    %v103 = vpow.pop %v102
    %v104 = vadd.f32 %v100, %v103
    %v105 = vlog2.pop %v104
    %v106 = vmul.f32 %v105, 0.6931472
    %v107 = vadd.f32 %v97, %v106
    %v108 = vadd.f32 %v92, %v107
    %v109 = vmax.f32 %v80, %v63
    %v110 = vmax.f32 %v109, %v96
    %v111 = vsub.f32 %v80, %v110
    %v112 = vmul.f32 %v111, 1.442695
    %v113 = vpow.pop %v112
    %v114 = vsub.f32 %v63, %v110
    %v115 = vmul.f32 %v114, 1.442695
    %v116 = vpow.pop %v115
    %v117 = vadd.f32 %v113, %v116
    %v118 = vsub.f32 %v96, %v110
    %v119 = vmul.f32 %v118, 1.442695
    %v120 = vpow.pop %v119
    %v121 = vadd.f32 %v117, %v120
    %v122 = vlog2.pop %v121
    %v123 = vmul.f32 %v122, 0.6931472
    %v124 = vadd.f32 %v110, %v123
    %v125 = vadd.f32 %v94, %v124
    %s126 = sadd.s32 %s42, 2
    %v127 = vstv %s126
    %vm128 = vcmp.eq.s32.totalorder %v127, %v40
    %v129 = vsel %vm128, 1, 0
    %v130 = vlaneseq
    %v131 = vshrl.u32 %v130, 7
    %v132 = vsub.s32 0, %v131
    %v133 = vrot.slane %v129, %v132
    %vm134 = vcmp.eq.s32.totalorder %v133, 1
    %v135 = vsel %vm134, %v108, %v89
    %v136 = vsel %vm134, %v125, %v90
    %s137 = scalar_lea.vmem %s0, 16
    %v138 = vld [vmem:[%s137] sm:$0xff]
    %s139 = scalar_lea.vmem %s1, 16
    %v140 = vld [vmem:[%s139] sm:$0xff]
    %v141 = vrot.slane %v125, 7
    %v142 = vsel %vm41, -1e+30, %v141
    %v143 = vmax.f32 %v108, %v142
    %v144 = vsub.f32 %v108, %v143
    %v145 = vmul.f32 %v144, 1.442695
    %v146 = vpow.pop %v145
    %v147 = vsub.f32 %v142, %v143
    %v148 = vmul.f32 %v147, 1.442695
    %v149 = vpow.pop %v148
    %v150 = vadd.f32 %v146, %v149
    %v151 = vlog2.pop %v150
    %v152 = vmul.f32 %v151, 0.6931472
    %v153 = vadd.f32 %v143, %v152
    %v154 = vadd.f32 %v138, %v153
    %v155 = vmax.f32 %v125, %v108
    %v156 = vmax.f32 %v155, %v142
    %v157 = vsub.f32 %v125, %v156
    %v158 = vmul.f32 %v157, 1.442695
    %v159 = vpow.pop %v158
    %v160 = vsub.f32 %v108, %v156
    %v161 = vmul.f32 %v160, 1.442695
    %v162 = vpow.pop %v161
    %v163 = vadd.f32 %v159, %v162
    %v164 = vsub.f32 %v142, %v156
    %v165 = vmul.f32 %v164, 1.442695
    %v166 = vpow.pop %v165
    %v167 = vadd.f32 %v163, %v166
    %v168 = vlog2.pop %v167
    %v169 = vmul.f32 %v168, 0.6931472
    %v170 = vadd.f32 %v156, %v169
    %v171 = vadd.f32 %v140, %v170
    %s172 = sadd.s32 %s42, 3
    %v173 = vstv %s172
    %vm174 = vcmp.eq.s32.totalorder %v173, %v40
    %v175 = vsel %vm174, 1, 0
    %v176 = vlaneseq
    %v177 = vshrl.u32 %v176, 7
    %v178 = vsub.s32 0, %v177
    %v179 = vrot.slane %v175, %v178
    %vm180 = vcmp.eq.s32.totalorder %v179, 1
    %v181 = vsel %vm180, %v154, %v135
    %v182 = vsel %vm180, %v171, %v136
    %s183 = scalar_lea.vmem %s0, 24
    %v184 = vld [vmem:[%s183] sm:$0xff]
    %s185 = scalar_lea.vmem %s1, 24
    %v186 = vld [vmem:[%s185] sm:$0xff]
    %v187 = vrot.slane %v171, 7
    %v188 = vsel %vm41, -1e+30, %v187
    %v189 = vmax.f32 %v154, %v188
    %v190 = vsub.f32 %v154, %v189
    %v191 = vmul.f32 %v190, 1.442695
    %v192 = vpow.pop %v191
    %v193 = vsub.f32 %v188, %v189
    %v194 = vmul.f32 %v193, 1.442695
    %v195 = vpow.pop %v194
    %v196 = vadd.f32 %v192, %v195
    %v197 = vlog2.pop %v196
    %v198 = vmul.f32 %v197, 0.6931472
    %v199 = vadd.f32 %v189, %v198
    %v200 = vadd.f32 %v184, %v199
    %v201 = vmax.f32 %v171, %v154
    %v202 = vmax.f32 %v201, %v188
    %v203 = vsub.f32 %v171, %v202
    %v204 = vmul.f32 %v203, 1.442695
    %v205 = vpow.pop %v204
    %v206 = vsub.f32 %v154, %v202
    %v207 = vmul.f32 %v206, 1.442695
    %v208 = vpow.pop %v207
    %v209 = vadd.f32 %v205, %v208
    %v210 = vsub.f32 %v188, %v202
    %v211 = vmul.f32 %v210, 1.442695
    %v212 = vpow.pop %v211
    %v213 = vadd.f32 %v209, %v212
    %v214 = vlog2.pop %v213
    %v215 = vmul.f32 %v214, 0.6931472
    %v216 = vadd.f32 %v202, %v215
    %v217 = vadd.f32 %v186, %v216
    %s218 = sadd.s32 %s42, 4
    %v219 = vstv %s218
    %vm220 = vcmp.eq.s32.totalorder %v219, %v40
    %v221 = vsel %vm220, 1, 0
    %v222 = vlaneseq
    %v223 = vshrl.u32 %v222, 7
    %v224 = vsub.s32 0, %v223
    %v225 = vrot.slane %v221, %v224
    %vm226 = vcmp.eq.s32.totalorder %v225, 1
    %v227 = vsel %vm226, %v200, %v181
    %v228 = vsel %vm226, %v217, %v182
    %s229 = scalar_lea.vmem %s0, 32
    %v230 = vld [vmem:[%s229] sm:$0xff]
    %s231 = scalar_lea.vmem %s1, 32
    %v232 = vld [vmem:[%s231] sm:$0xff]
    %v233 = vrot.slane %v217, 7
    %v234 = vsel %vm41, -1e+30, %v233
    %v235 = vmax.f32 %v200, %v234
    %v236 = vsub.f32 %v200, %v235
    %v237 = vmul.f32 %v236, 1.442695
    %v238 = vpow.pop %v237
    %v239 = vsub.f32 %v234, %v235
    %v240 = vmul.f32 %v239, 1.442695
    %v241 = vpow.pop %v240
    %v242 = vadd.f32 %v238, %v241
    %v243 = vlog2.pop %v242
    %v244 = vmul.f32 %v243, 0.6931472
    %v245 = vadd.f32 %v235, %v244
    %v246 = vadd.f32 %v230, %v245
    %v247 = vmax.f32 %v217, %v200
    %v248 = vmax.f32 %v247, %v234
    %v249 = vsub.f32 %v217, %v248
    %v250 = vmul.f32 %v249, 1.442695
    %v251 = vpow.pop %v250
    %v252 = vsub.f32 %v200, %v248
    %v253 = vmul.f32 %v252, 1.442695
    %v254 = vpow.pop %v253
    %v255 = vadd.f32 %v251, %v254
    %v256 = vsub.f32 %v234, %v248
    %v257 = vmul.f32 %v256, 1.442695
    %v258 = vpow.pop %v257
    %v259 = vadd.f32 %v255, %v258
    %v260 = vlog2.pop %v259
    %v261 = vmul.f32 %v260, 0.6931472
    %v262 = vadd.f32 %v248, %v261
    %v263 = vadd.f32 %v232, %v262
    %s264 = sadd.s32 %s42, 5
    %v265 = vstv %s264
    %vm266 = vcmp.eq.s32.totalorder %v265, %v40
    %v267 = vsel %vm266, 1, 0
    %v268 = vlaneseq
    %v269 = vshrl.u32 %v268, 7
    %v270 = vsub.s32 0, %v269
    %v271 = vrot.slane %v267, %v270
    %vm272 = vcmp.eq.s32.totalorder %v271, 1
    %v273 = vsel %vm272, %v246, %v227
    %v274 = vsel %vm272, %v263, %v228
    %s275 = scalar_lea.vmem %s0, 40
    %v276 = vld [vmem:[%s275] sm:$0xff]
    %s277 = scalar_lea.vmem %s1, 40
    %v278 = vld [vmem:[%s277] sm:$0xff]
    %v279 = vrot.slane %v263, 7
    %v280 = vsel %vm41, -1e+30, %v279
    %v281 = vmax.f32 %v246, %v280
    %v282 = vsub.f32 %v246, %v281
    %v283 = vmul.f32 %v282, 1.442695
    %v284 = vpow.pop %v283
    %v285 = vsub.f32 %v280, %v281
    %v286 = vmul.f32 %v285, 1.442695
    %v287 = vpow.pop %v286
    %v288 = vadd.f32 %v284, %v287
    %v289 = vlog2.pop %v288
    %v290 = vmul.f32 %v289, 0.6931472
    %v291 = vadd.f32 %v281, %v290
    %v292 = vadd.f32 %v276, %v291
    %v293 = vmax.f32 %v263, %v246
    %v294 = vmax.f32 %v293, %v280
    %v295 = vsub.f32 %v263, %v294
    %v296 = vmul.f32 %v295, 1.442695
    %v297 = vpow.pop %v296
    %v298 = vsub.f32 %v246, %v294
    %v299 = vmul.f32 %v298, 1.442695
    %v300 = vpow.pop %v299
    %v301 = vadd.f32 %v297, %v300
    %v302 = vsub.f32 %v280, %v294
    %v303 = vmul.f32 %v302, 1.442695
    %v304 = vpow.pop %v303
    %v305 = vadd.f32 %v301, %v304
    %v306 = vlog2.pop %v305
    %v307 = vmul.f32 %v306, 0.6931472
    %v308 = vadd.f32 %v294, %v307
    %v309 = vadd.f32 %v278, %v308
    %s310 = sadd.s32 %s42, 6
    %v311 = vstv %s310
    %vm312 = vcmp.eq.s32.totalorder %v311, %v40
    %v313 = vsel %vm312, 1, 0
    %v314 = vlaneseq
    %v315 = vshrl.u32 %v314, 7
    %v316 = vsub.s32 0, %v315
    %v317 = vrot.slane %v313, %v316
    %vm318 = vcmp.eq.s32.totalorder %v317, 1
    %v319 = vsel %vm318, %v292, %v273
    %v320 = vsel %vm318, %v309, %v274
    %s321 = scalar_lea.vmem %s0, 48
    %v322 = vld [vmem:[%s321] sm:$0xff]
    %s323 = scalar_lea.vmem %s1, 48
    %v324 = vld [vmem:[%s323] sm:$0xff]
    %v325 = vrot.slane %v309, 7
    %v326 = vsel %vm41, -1e+30, %v325
    %v327 = vmax.f32 %v292, %v326
    %v328 = vsub.f32 %v292, %v327
    %v329 = vmul.f32 %v328, 1.442695
    %v330 = vpow.pop %v329
    %v331 = vsub.f32 %v326, %v327
    %v332 = vmul.f32 %v331, 1.442695
    %v333 = vpow.pop %v332
    %v334 = vadd.f32 %v330, %v333
    %v335 = vlog2.pop %v334
    %v336 = vmul.f32 %v335, 0.6931472
    %v337 = vadd.f32 %v327, %v336
    %v338 = vadd.f32 %v322, %v337
    %v339 = vmax.f32 %v309, %v292
    %v340 = vmax.f32 %v339, %v326
    %v341 = vsub.f32 %v309, %v340
    %v342 = vmul.f32 %v341, 1.442695
    %v343 = vpow.pop %v342
    %v344 = vsub.f32 %v292, %v340
    %v345 = vmul.f32 %v344, 1.442695
    %v346 = vpow.pop %v345
    %v347 = vadd.f32 %v343, %v346
    %v348 = vsub.f32 %v326, %v340
    %v349 = vmul.f32 %v348, 1.442695
    %v350 = vpow.pop %v349
    %v351 = vadd.f32 %v347, %v350
    %v352 = vlog2.pop %v351
    %v353 = vmul.f32 %v352, 0.6931472
    %v354 = vadd.f32 %v340, %v353
    %v355 = vadd.f32 %v324, %v354
    %s356 = sadd.s32 %s42, 7
    %v357 = vstv %s356
    %vm358 = vcmp.eq.s32.totalorder %v357, %v40
    %v359 = vsel %vm358, 1, 0
    %v360 = vlaneseq
    %v361 = vshrl.u32 %v360, 7
    %v362 = vsub.s32 0, %v361
    %v363 = vrot.slane %v359, %v362
    %vm364 = vcmp.eq.s32.totalorder %v363, 1
    %v365 = vsel %vm364, %v338, %v319
    %v366 = vsel %vm364, %v355, %v320
    %s367 = scalar_lea.vmem %s0, 56
    %v368 = vld [vmem:[%s367] sm:$0xff]
    %s369 = scalar_lea.vmem %s1, 56
    %v370 = vld [vmem:[%s369] sm:$0xff]
    %v371 = vrot.slane %v355, 7
    %v372 = vsel %vm41, -1e+30, %v371
    %v373 = vmax.f32 %v338, %v372
    %v374 = vsub.f32 %v338, %v373
    %v375 = vmul.f32 %v374, 1.442695
    %v376 = vpow.pop %v375
    %v377 = vsub.f32 %v372, %v373
    %v378 = vmul.f32 %v377, 1.442695
    %v379 = vpow.pop %v378
    %v380 = vadd.f32 %v376, %v379
    %v381 = vlog2.pop %v380
    %v382 = vmul.f32 %v381, 0.6931472
    %v383 = vadd.f32 %v373, %v382
    %v384 = vadd.f32 %v368, %v383
    %v385 = vmax.f32 %v355, %v338
    %v386 = vmax.f32 %v385, %v372
    %v387 = vsub.f32 %v355, %v386
    %v388 = vmul.f32 %v387, 1.442695
    %v389 = vpow.pop %v388
    %v390 = vsub.f32 %v338, %v386
    %v391 = vmul.f32 %v390, 1.442695
    %v392 = vpow.pop %v391
    %v393 = vadd.f32 %v389, %v392
    %v394 = vsub.f32 %v372, %v386
    %v395 = vmul.f32 %v394, 1.442695
    %v396 = vpow.pop %v395
    %v397 = vadd.f32 %v393, %v396
    %v398 = vlog2.pop %v397
    %v399 = vmul.f32 %v398, 0.6931472
    %v400 = vadd.f32 %v386, %v399
    %v401 = vadd.f32 %v370, %v400
    %s402 = sadd.s32 %s42, 8
    %v403 = vstv %s402
    %vm404 = vcmp.eq.s32.totalorder %v403, %v40
    %v405 = vsel %vm404, 1, 0
    %v406 = vlaneseq
    %v407 = vshrl.u32 %v406, 7
    %v408 = vsub.s32 0, %v407
    %v409 = vrot.slane %v405, %v408
    %vm410 = vcmp.eq.s32.totalorder %v409, 1
    %v411 = vsel %vm410, %v384, %v365
    %v412 = vsel %vm410, %v401, %v366
    %vm413 = vcmask 15360
    %414 = vst.msk [vmem:[#allocation2] sm:$0xff] %vm413, %v384
    %415 = vst.msk [vmem:[#allocation3] sm:$0xff] %vm413, %v401
    %416 = vst.msk [vmem:[#allocation4] sm:$0xff] %vm413, %v411
    %417 = vst.msk [vmem:[#allocation5] sm:$0xff] %vm413, %v412
    // Predicated region
    $region22: #{tpu_custom_call.1} parent=1 // pred_check
      %p418 = pneg %p21
    $region23: #{tpu_custom_call.1} parent=1 // pred_check_branch
      %420 = sbr.rel (%p418) target = $region25
    $region24: #{tpu_custom_call.1} parent=1 // pred_region
      %v421 = vld [vmem:[%s3] sm:$0x1]
      %v422 = vlaneseq
      %v423 = vshrl.u32 %v422, 7
      %v424 = vsub.s32 0, %v423
      %v425 = vrot.slane %v421, %v424
      %vm426 = vcmp.eq.s32.totalorder %v19, %v425
      %v427 = vld [vmem:[#allocation4] sm:$0xff]
      %v428 = vsel %vm426, %v427, -1e+30
      %v429 = vsub.s32 %v421, 1
      %v430 = vlaneseq
      %v431 = vshrl.u32 %v430, 7
      %v432 = vsub.s32 0, %v431
      %v433 = vrot.slane %v429, %v432
      %vm434 = vcmp.eq.s32.totalorder %v19, %v433
      %v435 = vld [vmem:[#allocation5] sm:$0xff]
      %v436 = vsel %vm434, %v435, -1e+30
      %v437 = vsel %vm413, %v428, -inf
      %v438 = vrot.slane %v437, 4
      %v439 = vmax.f32 %v437, %v438
      %v440 = vrot.slane %v439, 2
      %v441 = vmax.f32 %v439, %v440
      %v442 = vrot.slane %v441, 1
      %v443 = vmax.f32 %v441, %v442
      %v444 = vsel %vm413, %v436, -inf
      %v445 = vrot.slane %v444, 4
      %v446 = vmax.f32 %v444, %v445
      %v447 = vrot.slane %v446, 2
      %v448 = vmax.f32 %v446, %v447
      %v449 = vrot.slane %v448, 1
      %v450 = vmax.f32 %v448, %v449
      %v451 = vmax.f32 %v443, %v450
      %v452 = vsub.f32 %v428, %v451
      %v453 = vmul.f32 %v452, 1.442695
      %v454 = vpow.pop %v453
      %v455 = vsel %vm413, %v454, 0.0
      %v456 = vrot.slane %v455, 4
      %v457 = vadd.f32 %v455, %v456
      %v458 = vrot.slane %v457, 2
      %v459 = vadd.f32 %v457, %v458
      %v460 = vrot.slane %v459, 1
      %v461 = vadd.f32 %v459, %v460
      %v462 = vsub.f32 %v436, %v451
      %v463 = vmul.f32 %v462, 1.442695
      %v464 = vpow.pop %v463
      %v465 = vsel %vm413, %v464, 0.0
      %v466 = vrot.slane %v465, 4
      %v467 = vadd.f32 %v465, %v466
      %v468 = vrot.slane %v467, 2
      %v469 = vadd.f32 %v467, %v468
      %v470 = vrot.slane %v469, 1
      %v471 = vadd.f32 %v469, %v470
      %v472 = vadd.f32 %v461, %v471
      %v473 = vlog2.pop %v472
      %v474 = vmul.f32 %v473, 0.6931472
      %v475 = vadd.f32 %v451, %v474
      %vm476 = vcmask 8192
      %477 = vst.msk [vmem:[#allocation6] sm:$0x1] %vm476, %v475
    $region25: #{tpu_custom_call.1} parent=1 // pred_fallthru
      _
    // Predicated region
    $region26: #{tpu_custom_call.1} parent=1 // pred_check
      _
    $region27: #{tpu_custom_call.1} parent=1 // pred_check_branch
      %479 = sbr.rel (0) target = $region29
    $region28: #{tpu_custom_call.1} parent=1 // pred_region
      %s481 = ssub.s32 16, 16
      %482 = vsyncadd [#allocation7], %s481
      %s484 = sshll.u32 [#allocation6], 4
      %s485 = int_to_ptr.vmem [resolvable:$true] %s484
      %487 = dma.vmem_to_hbm [thread:$0]  %s485, 16, %s4, [#allocation7]
    $region29: #{tpu_custom_call.1} parent=1 // pred_fallthru
      _
    // Predicated region
    $region30: #{tpu_custom_call.1} parent=1 // pred_check
      _
    $region31: #{tpu_custom_call.1} parent=1 // pred_check_branch
      %489 = sbr.rel (0) target = $region33
    $region32: #{tpu_custom_call.1} parent=1 // pred_region
      %490 = dma.done [#allocation7], 16
    $region33: #{tpu_custom_call.1} parent=1 // pred_fallthru
      _
    %491 = vsyncpa [#allocation7], 1

</llo_original>
